<compile_context>
chip_gen: v6e
topology: v6e:2x2x1
jax: 0.10.0
libtpu: 0.0.40
codegen_flags: <defaults>
</compile_context>

<pallas_src>
import functools
import math

import jax
import jax.numpy as jnp
from jax import lax
from jax.experimental import pallas as pl
from jax.experimental.pallas import tpu as pltpu

_HALF_LOG_2PI = 0.9189385332046727  # 0.5 * log(2*pi)


def _lgamma_digamma(x):
    """Joint lgamma(x)/digamma(x) for x >= 1.

    Shift by 6 (z = x + 6 >= 7), then Stirling / asymptotic series; the shift
    correction uses a single product P(x) = prod_{k=0..5}(x+k):
        lgamma(x)  = lgamma(z)  - log(P)
        digamma(x) = digamma(z) - P'(x)/P(x)
    Shared EUP work: log(z), 1/z, log(P), 1/P  (2 logs + 2 reciprocals).
    Exact divides are kept (approx reciprocals risk the 1e-4 tolerance).
    """
    z = x + 6.0
    log_z = jnp.log(z)
    inv = 1.0 / z
    inv2 = inv * inv

    # P(x) = x(x+1)(x+2)(x+3)(x+4)(x+5); P'(x) via Horner (VPU only).
    p = x * (x + 1.0) * (x + 2.0) * (x + 3.0) * (x + 4.0) * (x + 5.0)
    pp = ((((6.0 * x + 75.0) * x + 340.0) * x + 675.0) * x + 548.0) * x + 120.0
    log_p = jnp.log(p)
    recip_p = 1.0 / p

    # Stirling: lgamma(z) = (z-0.5)log z - z + 0.5 log(2pi) + 1/(12z) - 1/(360z^3) + 1/(1260z^5)
    lg = (
        (z - 0.5) * log_z
        - z
        + _HALF_LOG_2PI
        + inv * (1.0 / 12.0 - inv2 * (1.0 / 360.0 - inv2 * (1.0 / 1260.0)))
        - log_p
    )
    # Asymptotic: digamma(z) = log z - 1/(2z) - 1/(12z^2) + 1/(120z^4) - 1/(252z^6)
    dg = (
        log_z
        - 0.5 * inv
        - inv2 * (1.0 / 12.0 - inv2 * (1.0 / 120.0 - inv2 * (1.0 / 252.0)))
        - pp * recip_p
    )
    return lg, dg


def _kl_div_kernel(ev_ref, lab_ref, out_ref, *, lgamma_c, n_rows, tile_n):
    """One (tile_n, C) row block -> one per-tile partial sum (lane 0..127)."""
    i = pl.program_id(0)

    # (tile_n, C) HBM-layout block -> (C, tile_n): classes on sublanes, rows on
    # the 128-lane axis.  The transpose uses the XLU (otherwise idle here) and
    # makes every transcendental / VPU op lane-dense.
    ev = jnp.transpose(ev_ref[...].astype(jnp.float32))    # (C, TN)
    lab = jnp.transpose(lab_ref[...].astype(jnp.float32))  # (C, TN)

    at_m1 = (1.0 - lab) * ev                 # == alphas_tilde - 1  (>= 0)
    alphas_tilde = at_m1 + 1.0               # (C, TN), >= 1
    num_classes = alphas_tilde.shape[0]
    strength_tilde = jnp.sum(at_m1, axis=0, keepdims=True) + float(num_classes)  # (1, TN)

    lg_at, dg_at = _lgamma_digamma(alphas_tilde)    # (C, TN)
    lg_st, dg_st = _lgamma_digamma(strength_tilde)  # (1, TN), lane-dense

    first = lg_st - lgamma_c - jnp.sum(lg_at, axis=0, keepdims=True)        # (1, TN)
    second = jnp.sum(at_m1 * (dg_at - dg_st), axis=0, keepdims=True)        # (1, TN)
    per_row = first + second                                                # (1, TN)

    # Ragged tail: mask rows past n_rows (static Python check -> no cost when
    # n_rows divides tile_n).  jnp.where is per-lane, so garbage/NaN from the
    # out-of-bounds part of the last block cannot leak into valid lanes.
    if n_rows % tile_n != 0:
        row = i * tile_n + lax.broadcasted_iota(jnp.int32, per_row.shape, 1)
        per_row = jnp.where(row < n_rows, per_row, 0.0)

    partial = jnp.sum(per_row, axis=1, keepdims=True)       # (1, 1)
    out_ref[...] = jnp.broadcast_to(partial, (1, 128))      # lane-dense store


def _round_up(x, m):
    return (x + m - 1) // m * m


def _choose_tile_n(n_rows, num_classes, vmem_budget_bytes):
    """Largest tile whose estimated VMEM working set fits the budget."""
    padded_c = _round_up(num_classes, 128)  # (tile_n, C) blocks are lane-padded
    # 2 inputs x 2 pipeline buffers of the lane-padded block, plus ~12 live
    # dense (C, tile_n) f32 temporaries inside the body (conservative).
    bytes_per_row = 4 * (2 * 2 * padded_c + 12 * num_classes)
    tile = max(int(vmem_budget_bytes) // bytes_per_row, 8)
    tile = min(tile, 32768)
    if n_rows <= tile:
        return _round_up(max(n_rows, 1), 8)
    return max((tile // 128) * 128, 128)


def kl_divergence_loss(evidences, labels, *, tile_n=None):
    """Pallas equivalent of KLDivergenceLoss.forward(evidences, labels)."""
    num_classes = evidences.shape[-1]
    ev2 = evidences.reshape(-1, num_classes)   # (N, C), natural HBM layout
    lab2 = labels.reshape(-1, num_classes)
    n_rows = ev2.shape[0]

    # Generation-aware VMEM budget (v7x has 64 MiB physical vs 128 on v5e/v6e).
    try:
        vmem_cap = int(pltpu.get_tpu_info().vmem_capacity_bytes)
    except Exception:
        vmem_cap = 64 << 20  # conservative (v7x-sized) fallback
    if tile_n is None:
        tile_n = _choose_tile_n(n_rows, num_classes, min(vmem_cap // 4, 16 << 20))
    else:
        tile_n = _round_up(int(tile_n), 8)
    num_tiles = (n_rows + tile_n - 1) // tile_n
    vmem_limit = int(min(vmem_cap // 2, 32 << 20))

    kernel = functools.partial(
        _kl_div_kernel,
        lgamma_c=float(math.lgamma(num_classes)),
        n_rows=n_rows,
        tile_n=tile_n,
    )
    partials = pl.pallas_call(
        kernel,
        out_shape=jax.ShapeDtypeStruct((num_tiles, 128), jnp.float32),
        grid_spec=pltpu.PrefetchScalarGridSpec(
            num_scalar_prefetch=0,
            grid=(num_tiles,),
            in_specs=[
                pl.BlockSpec((tile_n, num_classes), lambda i: (i, 0)),
                pl.BlockSpec((tile_n, num_classes), lambda i: (i, 0)),
            ],
            out_specs=pl.BlockSpec((1, 128), lambda i: (i, 0)),
        ),
        compiler_params=pltpu.CompilerParams(
            dimension_semantics=("parallel",),   # both TCs on v7x
            vmem_limit_bytes=vmem_limit,
        ),
    )(ev2, lab2)
    return jnp.sum(partials[:, 0]) / jnp.float32(n_rows)


def _reference(evidences, labels):
    """Pure-JAX reference mirroring the PyTorch forward, for validation."""
    from jax.scipy.special import digamma, gammaln

    num_classes = evidences.shape[-1]
    alphas = evidences + 1.0
    at = labels + (1.0 - labels) * alphas
    st = jnp.sum(at, axis=-1, keepdims=True)
    first = gammaln(st) - gammaln(jnp.float32(num_classes)) - jnp.sum(
        gammaln(at), axis=-1, keepdims=True
    )
    second = jnp.sum((at - 1.0) * (digamma(at) - digamma(st)), axis=-1, keepdims=True)
    return jnp.mean(first + second)


if __name__ == "__main__":
    key = jax.random.PRNGKey(0)
    k_ev, k_lab, k_ev2, k_lab2 = jax.random.split(key, 4)

    batch, seq, num_classes = 2, 8, 16
    # Non-negative "evidence" values (as an evidential head would produce).
    evidences = jax.random.uniform(
        k_ev, (batch, seq, num_classes), dtype=jnp.float32, minval=0.0, maxval=5.0
    )
    label_ids = jax.random.randint(k_lab, (batch, seq), 0, num_classes)
    labels = jax.nn.one_hot(label_ids, num_classes, dtype=jnp.float32)

    loss = kl_divergence_loss(evidences, labels)
    jax.block_until_ready(loss)
    ref = _reference(evidences, labels)
    assert jnp.allclose(loss, ref, rtol=1e-4, atol=1e-4), (loss, ref)

    # Ragged / multi-tile path: exercises tail masking, per-tile partial
    # outputs and the parallel grid (n_rows=21, tile_n=8 -> 3 tiles, last masked).
    b2, s2 = 3, 7
    ev_r = jax.random.uniform(
        k_ev2, (b2, s2, num_classes), dtype=jnp.float32, minval=0.0, maxval=5.0
    )
    ids_r = jax.random.randint(k_lab2, (b2, s2), 0, num_classes)
    lab_r = jax.nn.one_hot(ids_r, num_classes, dtype=jnp.float32)
    loss_r = kl_divergence_loss(ev_r, lab_r, tile_n=8)
    jax.block_until_ready(loss_r)
    ref_r = _reference(ev_r, lab_r)
    assert jnp.allclose(loss_r, ref_r, rtol=1e-4, atol=1e-4), (loss_r, ref_r)

    print("KERNEL_OK")
</pallas_src>

<mosaic_0001>
module attributes {stable_mosaic.version = 11 : i64} {
  func.func @_kl_div_kernel(%arg0: i32, %arg1: memref<16x16xf32, #tpu.memory_space<vmem>>, %arg2: memref<16x16xf32, #tpu.memory_space<vmem>>, %arg3: memref<1x128xf32, #tpu.memory_space<vmem>>) attributes {dimension_semantics = [#tpu.dimension_semantics<parallel>], iteration_bounds = array<i64: 1>, scalar_prefetch = 0 : i64, scratch_operands = 0 : i64, tpu.core_type = #tpu.core_type<tc>, window_params = [{transform_indices = @transform_0, window_bounds = array<i64: 16, 16>}, {transform_indices = @transform_1, window_bounds = array<i64: 16, 16>}, {transform_indices = @transform_2, window_bounds = array<i64: 1, 128>}]} {
    %c0 = arith.constant 0 : index
    %c0_0 = arith.constant 0 : index
    %0 = vector.load %arg1[%c0, %c0_0] : memref<16x16xf32, #tpu.memory_space<vmem>>, vector<16x16xf32>
    %1 = tpu.transpose %0, [1, 0] : vector<16x16xf32> -> vector<16x16xf32>
    %c0_1 = arith.constant 0 : index
    %c0_2 = arith.constant 0 : index
    %2 = vector.load %arg2[%c0_1, %c0_2] : memref<16x16xf32, #tpu.memory_space<vmem>>, vector<16x16xf32>
    %3 = tpu.transpose %2, [1, 0] : vector<16x16xf32> -> vector<16x16xf32>
    %cst = arith.constant 1.000000e+00 : f32
    %4 = vector.broadcast %cst : f32 to vector<16x16xf32>
    %5 = arith.subf %4, %3 : vector<16x16xf32>
    %6 = arith.mulf %5, %1 : vector<16x16xf32>
    %cst_3 = arith.constant 1.000000e+00 : f32
    %7 = vector.broadcast %cst_3 : f32 to vector<16x16xf32>
    %8 = arith.addf %6, %7 : vector<16x16xf32>
    %cst_4 = arith.constant dense<0.000000e+00> : vector<16xf32>
    %9 = vector.multi_reduction <add>, %6, %cst_4 [0] : vector<16x16xf32> to vector<16xf32>
    %10 = vector.shape_cast %9 : vector<16xf32> to vector<1x16xf32>
    %cst_5 = arith.constant 1.600000e+01 : f32
    %11 = vector.broadcast %cst_5 : f32 to vector<1x16xf32>
    %12 = arith.addf %10, %11 : vector<1x16xf32>
    %cst_6 = arith.constant 6.000000e+00 : f32
    %13 = vector.broadcast %cst_6 : f32 to vector<16x16xf32>
    %14 = arith.addf %8, %13 : vector<16x16xf32>
    %15 = math.log %14 : vector<16x16xf32>
    %cst_7 = arith.constant 1.000000e+00 : f32
    %16 = vector.broadcast %cst_7 : f32 to vector<16x16xf32>
    %17 = arith.divf %16, %14 : vector<16x16xf32>
    %18 = arith.mulf %17, %17 : vector<16x16xf32>
    %cst_8 = arith.constant 1.000000e+00 : f32
    %19 = vector.broadcast %cst_8 : f32 to vector<16x16xf32>
    %20 = arith.addf %8, %19 : vector<16x16xf32>
    %21 = arith.mulf %8, %20 : vector<16x16xf32>
    %cst_9 = arith.constant 2.000000e+00 : f32
    %22 = vector.broadcast %cst_9 : f32 to vector<16x16xf32>
    %23 = arith.addf %8, %22 : vector<16x16xf32>
    %24 = arith.mulf %21, %23 : vector<16x16xf32>
    %cst_10 = arith.constant 3.000000e+00 : f32
    %25 = vector.broadcast %cst_10 : f32 to vector<16x16xf32>
    %26 = arith.addf %8, %25 : vector<16x16xf32>
    %27 = arith.mulf %24, %26 : vector<16x16xf32>
    %cst_11 = arith.constant 4.000000e+00 : f32
    %28 = vector.broadcast %cst_11 : f32 to vector<16x16xf32>
    %29 = arith.addf %8, %28 : vector<16x16xf32>
    %30 = arith.mulf %27, %29 : vector<16x16xf32>
    %cst_12 = arith.constant 5.000000e+00 : f32
    %31 = vector.broadcast %cst_12 : f32 to vector<16x16xf32>
    %32 = arith.addf %8, %31 : vector<16x16xf32>
    %33 = arith.mulf %30, %32 : vector<16x16xf32>
    %cst_13 = arith.constant 6.000000e+00 : f32
    %34 = vector.broadcast %cst_13 : f32 to vector<16x16xf32>
    %35 = arith.mulf %34, %8 : vector<16x16xf32>
    %cst_14 = arith.constant 7.500000e+01 : f32
    %36 = vector.broadcast %cst_14 : f32 to vector<16x16xf32>
    %37 = arith.addf %35, %36 : vector<16x16xf32>
    %38 = arith.mulf %37, %8 : vector<16x16xf32>
    %cst_15 = arith.constant 3.400000e+02 : f32
    %39 = vector.broadcast %cst_15 : f32 to vector<16x16xf32>
    %40 = arith.addf %38, %39 : vector<16x16xf32>
    %41 = arith.mulf %40, %8 : vector<16x16xf32>
    %cst_16 = arith.constant 6.750000e+02 : f32
    %42 = vector.broadcast %cst_16 : f32 to vector<16x16xf32>
    %43 = arith.addf %41, %42 : vector<16x16xf32>
    %44 = arith.mulf %43, %8 : vector<16x16xf32>
    %cst_17 = arith.constant 5.480000e+02 : f32
    %45 = vector.broadcast %cst_17 : f32 to vector<16x16xf32>
    %46 = arith.addf %44, %45 : vector<16x16xf32>
    %47 = arith.mulf %46, %8 : vector<16x16xf32>
    %cst_18 = arith.constant 1.200000e+02 : f32
    %48 = vector.broadcast %cst_18 : f32 to vector<16x16xf32>
    %49 = arith.addf %47, %48 : vector<16x16xf32>
    %50 = math.log %33 : vector<16x16xf32>
    %cst_19 = arith.constant 1.000000e+00 : f32
    %51 = vector.broadcast %cst_19 : f32 to vector<16x16xf32>
    %52 = arith.divf %51, %33 : vector<16x16xf32>
    %cst_20 = arith.constant 5.000000e-01 : f32
    %53 = vector.broadcast %cst_20 : f32 to vector<16x16xf32>
    %54 = arith.subf %14, %53 : vector<16x16xf32>
    %55 = arith.mulf %54, %15 : vector<16x16xf32>
    %56 = arith.subf %55, %14 : vector<16x16xf32>
    %cst_21 = arith.constant 0.918938517 : f32
    %57 = vector.broadcast %cst_21 : f32 to vector<16x16xf32>
    %58 = arith.addf %56, %57 : vector<16x16xf32>
    %cst_22 = arith.constant 7.93650805E-4 : f32
    %59 = vector.broadcast %cst_22 : f32 to vector<16x16xf32>
    %60 = arith.mulf %18, %59 : vector<16x16xf32>
    %cst_23 = arith.constant 0.00277777785 : f32
    %61 = vector.broadcast %cst_23 : f32 to vector<16x16xf32>
    %62 = arith.subf %61, %60 : vector<16x16xf32>
    %63 = arith.mulf %18, %62 : vector<16x16xf32>
    %cst_24 = arith.constant 0.0833333358 : f32
    %64 = vector.broadcast %cst_24 : f32 to vector<16x16xf32>
    %65 = arith.subf %64, %63 : vector<16x16xf32>
    %66 = arith.mulf %17, %65 : vector<16x16xf32>
    %67 = arith.addf %58, %66 : vector<16x16xf32>
    %68 = arith.subf %67, %50 : vector<16x16xf32>
    %cst_25 = arith.constant 5.000000e-01 : f32
    %69 = vector.broadcast %cst_25 : f32 to vector<16x16xf32>
    %70 = arith.mulf %69, %17 : vector<16x16xf32>
    %71 = arith.subf %15, %70 : vector<16x16xf32>
    %cst_26 = arith.constant 0.0039682542 : f32
    %72 = vector.broadcast %cst_26 : f32 to vector<16x16xf32>
    %73 = arith.mulf %18, %72 : vector<16x16xf32>
    %cst_27 = arith.constant 0.00833333377 : f32
    %74 = vector.broadcast %cst_27 : f32 to vector<16x16xf32>
    %75 = arith.subf %74, %73 : vector<16x16xf32>
    %76 = arith.mulf %18, %75 : vector<16x16xf32>
    %cst_28 = arith.constant 0.0833333358 : f32
    %77 = vector.broadcast %cst_28 : f32 to vector<16x16xf32>
    %78 = arith.subf %77, %76 : vector<16x16xf32>
    %79 = arith.mulf %18, %78 : vector<16x16xf32>
    %80 = arith.subf %71, %79 : vector<16x16xf32>
    %81 = arith.mulf %49, %52 : vector<16x16xf32>
    %82 = arith.subf %80, %81 : vector<16x16xf32>
    %cst_29 = arith.constant 6.000000e+00 : f32
    %83 = vector.broadcast %cst_29 : f32 to vector<1x16xf32>
    %84 = arith.addf %12, %83 : vector<1x16xf32>
    %85 = math.log %84 : vector<1x16xf32>
    %cst_30 = arith.constant 1.000000e+00 : f32
    %86 = vector.broadcast %cst_30 : f32 to vector<1x16xf32>
    %87 = arith.divf %86, %84 : vector<1x16xf32>
    %88 = arith.mulf %87, %87 : vector<1x16xf32>
    %cst_31 = arith.constant 1.000000e+00 : f32
    %89 = vector.broadcast %cst_31 : f32 to vector<1x16xf32>
    %90 = arith.addf %12, %89 : vector<1x16xf32>
    %91 = arith.mulf %12, %90 : vector<1x16xf32>
    %cst_32 = arith.constant 2.000000e+00 : f32
    %92 = vector.broadcast %cst_32 : f32 to vector<1x16xf32>
    %93 = arith.addf %12, %92 : vector<1x16xf32>
    %94 = arith.mulf %91, %93 : vector<1x16xf32>
    %cst_33 = arith.constant 3.000000e+00 : f32
    %95 = vector.broadcast %cst_33 : f32 to vector<1x16xf32>
    %96 = arith.addf %12, %95 : vector<1x16xf32>
    %97 = arith.mulf %94, %96 : vector<1x16xf32>
    %cst_34 = arith.constant 4.000000e+00 : f32
    %98 = vector.broadcast %cst_34 : f32 to vector<1x16xf32>
    %99 = arith.addf %12, %98 : vector<1x16xf32>
    %100 = arith.mulf %97, %99 : vector<1x16xf32>
    %cst_35 = arith.constant 5.000000e+00 : f32
    %101 = vector.broadcast %cst_35 : f32 to vector<1x16xf32>
    %102 = arith.addf %12, %101 : vector<1x16xf32>
    %103 = arith.mulf %100, %102 : vector<1x16xf32>
    %cst_36 = arith.constant 6.000000e+00 : f32
    %104 = vector.broadcast %cst_36 : f32 to vector<1x16xf32>
    %105 = arith.mulf %104, %12 : vector<1x16xf32>
    %cst_37 = arith.constant 7.500000e+01 : f32
    %106 = vector.broadcast %cst_37 : f32 to vector<1x16xf32>
    %107 = arith.addf %105, %106 : vector<1x16xf32>
    %108 = arith.mulf %107, %12 : vector<1x16xf32>
    %cst_38 = arith.constant 3.400000e+02 : f32
    %109 = vector.broadcast %cst_38 : f32 to vector<1x16xf32>
    %110 = arith.addf %108, %109 : vector<1x16xf32>
    %111 = arith.mulf %110, %12 : vector<1x16xf32>
    %cst_39 = arith.constant 6.750000e+02 : f32
    %112 = vector.broadcast %cst_39 : f32 to vector<1x16xf32>
    %113 = arith.addf %111, %112 : vector<1x16xf32>
    %114 = arith.mulf %113, %12 : vector<1x16xf32>
    %cst_40 = arith.constant 5.480000e+02 : f32
    %115 = vector.broadcast %cst_40 : f32 to vector<1x16xf32>
    %116 = arith.addf %114, %115 : vector<1x16xf32>
    %117 = arith.mulf %116, %12 : vector<1x16xf32>
    %cst_41 = arith.constant 1.200000e+02 : f32
    %118 = vector.broadcast %cst_41 : f32 to vector<1x16xf32>
    %119 = arith.addf %117, %118 : vector<1x16xf32>
    %120 = math.log %103 : vector<1x16xf32>
    %cst_42 = arith.constant 1.000000e+00 : f32
    %121 = vector.broadcast %cst_42 : f32 to vector<1x16xf32>
    %122 = arith.divf %121, %103 : vector<1x16xf32>
    %cst_43 = arith.constant 5.000000e-01 : f32
    %123 = vector.broadcast %cst_43 : f32 to vector<1x16xf32>
    %124 = arith.subf %84, %123 : vector<1x16xf32>
    %125 = arith.mulf %124, %85 : vector<1x16xf32>
    %126 = arith.subf %125, %84 : vector<1x16xf32>
    %cst_44 = arith.constant 0.918938517 : f32
    %127 = vector.broadcast %cst_44 : f32 to vector<1x16xf32>
    %128 = arith.addf %126, %127 : vector<1x16xf32>
    %cst_45 = arith.constant 7.93650805E-4 : f32
    %129 = vector.broadcast %cst_45 : f32 to vector<1x16xf32>
    %130 = arith.mulf %88, %129 : vector<1x16xf32>
    %cst_46 = arith.constant 0.00277777785 : f32
    %131 = vector.broadcast %cst_46 : f32 to vector<1x16xf32>
    %132 = arith.subf %131, %130 : vector<1x16xf32>
    %133 = arith.mulf %88, %132 : vector<1x16xf32>
    %cst_47 = arith.constant 0.0833333358 : f32
    %134 = vector.broadcast %cst_47 : f32 to vector<1x16xf32>
    %135 = arith.subf %134, %133 : vector<1x16xf32>
    %136 = arith.mulf %87, %135 : vector<1x16xf32>
    %137 = arith.addf %128, %136 : vector<1x16xf32>
    %138 = arith.subf %137, %120 : vector<1x16xf32>
    %cst_48 = arith.constant 5.000000e-01 : f32
    %139 = vector.broadcast %cst_48 : f32 to vector<1x16xf32>
    %140 = arith.mulf %139, %87 : vector<1x16xf32>
    %141 = arith.subf %85, %140 : vector<1x16xf32>
    %cst_49 = arith.constant 0.0039682542 : f32
    %142 = vector.broadcast %cst_49 : f32 to vector<1x16xf32>
    %143 = arith.mulf %88, %142 : vector<1x16xf32>
    %cst_50 = arith.constant 0.00833333377 : f32
    %144 = vector.broadcast %cst_50 : f32 to vector<1x16xf32>
    %145 = arith.subf %144, %143 : vector<1x16xf32>
    %146 = arith.mulf %88, %145 : vector<1x16xf32>
    %cst_51 = arith.constant 0.0833333358 : f32
    %147 = vector.broadcast %cst_51 : f32 to vector<1x16xf32>
    %148 = arith.subf %147, %146 : vector<1x16xf32>
    %149 = arith.mulf %88, %148 : vector<1x16xf32>
    %150 = arith.subf %141, %149 : vector<1x16xf32>
    %151 = arith.mulf %119, %122 : vector<1x16xf32>
    %152 = arith.subf %150, %151 : vector<1x16xf32>
    %cst_52 = arith.constant 27.899271 : f32
    %153 = vector.broadcast %cst_52 : f32 to vector<1x16xf32>
    %154 = arith.subf %138, %153 : vector<1x16xf32>
    %cst_53 = arith.constant dense<0.000000e+00> : vector<16xf32>
    %155 = vector.multi_reduction <add>, %68, %cst_53 [0] : vector<16x16xf32> to vector<16xf32>
    %156 = vector.shape_cast %155 : vector<16xf32> to vector<1x16xf32>
    %157 = arith.subf %154, %156 : vector<1x16xf32>
    %158 = vector.broadcast %152 : vector<1x16xf32> to vector<16x16xf32>
    %159 = arith.subf %82, %158 : vector<16x16xf32>
    %160 = arith.mulf %6, %159 : vector<16x16xf32>
    %cst_54 = arith.constant dense<0.000000e+00> : vector<16xf32>
    %161 = vector.multi_reduction <add>, %160, %cst_54 [0] : vector<16x16xf32> to vector<16xf32>
    %162 = vector.shape_cast %161 : vector<16xf32> to vector<1x16xf32>
    %163 = arith.addf %157, %162 : vector<1x16xf32>
    %cst_55 = arith.constant dense<0.000000e+00> : vector<1xf32>
    %164 = vector.multi_reduction <add>, %163, %cst_55 [1] : vector<1x16xf32> to vector<1xf32>
    %165 = vector.shape_cast %164 : vector<1xf32> to vector<1x1xf32>
    %166 = vector.shape_cast %165 : vector<1x1xf32> to vector<1x1xf32>
    %167 = vector.broadcast %166 : vector<1x1xf32> to vector<1x128xf32>
    %c0_56 = arith.constant 0 : index
    %c0_57 = arith.constant 0 : index
    %168 = vector.load %arg3[%c0_56, %c0_57] : memref<1x128xf32, #tpu.memory_space<vmem>>, vector<1x128xf32>
    tpu.vector_store %arg3[%c0_56, %c0_57], %167 {strides = array<i32>} : memref<1x128xf32, #tpu.memory_space<vmem>>, vector<1x128xf32>,
    return
  }
  func.func @transform_0(%arg0: i32) -> (i32, i32) {
    %c0_i32 = arith.constant 0 : i32
    %c0_i32_0 = arith.constant 0 : i32
    return %arg0, %c0_i32 : i32, i32
  }
  func.func @transform_1(%arg0: i32) -> (i32, i32) {
    %c0_i32 = arith.constant 0 : i32
    %c0_i32_0 = arith.constant 0 : i32
    return %arg0, %c0_i32 : i32, i32
  }
  func.func @transform_2(%arg0: i32) -> (i32, i32) {
    %c0_i32 = arith.constant 0 : i32
    %c0_i32_0 = arith.constant 0 : i32
    return %arg0, %c0_i32 : i32, i32
  }
}

</mosaic_0001>

<llo_original>
// kernel: tpu_custom_call.1
$region0: #{tpu_custom_call.1}
  #allocation0 [shape = 'u32[]', space=smem, size = 0x4, offset = 0x4, fixed_abs, tag = 'smem constant byte address 0x4 - core index']
  #allocation1 [shape = 'u32[144,128]{1,0:T(1,128)}', space=vmem, size = 0x12000, scoped, tag = 'internal scratch']
  %s0 = inlined_call_operand.hbm [shape: f32[16,16], index: 0, kind: input, shape index: {}]
  %s1 = inlined_call_operand.hbm [shape: f32[16,16], index: 1, kind: input, shape index: {}]
  %s2 = inlined_call_operand.hbm [shape: f32[1,128], index: 2, kind: output, shape index: {}]
  %s3 = sld [smem:[#allocation0]]
  $region26: #{tpu_custom_call.1} parent=0
    _
  %s5 = ssub.s32 1, %s3
  %s6 = scalar_select 0, %s5, %s3
  $region1: #{tpu_custom_call.1} parent=0
    #allocation2 [shape = 'u8[8192]{0}', space=vmem, size = 0x2000, scoped, tag = 'input window, operand 0, single buffered']
    #allocation3 [shape = 's32[1]{0}', space=sflag, size = 0x4, scoped, tag = 'scoped memory for tpu_custom_call.1']
    #allocation4 [shape = 's32[1]{0}', space=sflag, size = 0x4, scoped, tag = 'scoped memory for tpu_custom_call.1']
    #allocation5 [shape = 'u8[8192]{0}', space=vmem, size = 0x2000, scoped, tag = 'input window, operand 1, single buffered']
    #allocation6 [shape = 's32[1]{0}', space=sflag, size = 0x4, scoped, tag = 'scoped memory for tpu_custom_call.1']
    #allocation7 [shape = 'u8[512]{0}', space=vmem, size = 0x400, scoped, tag = 'output window, operand 0, single buffered']
    %7 = vsyncpa [#allocation3], 0
    %8 = vsyncpa [#allocation6], 0
    %9 = vsyncpa [#allocation4], 0
    // Predicated region
    $region2: #{tpu_custom_call.1} parent=1 // pred_check
      _
    $region3: #{tpu_custom_call.1} parent=1 // pred_check_branch
      %11 = sbr.rel (0) target = $region5
    $region4: #{tpu_custom_call.1} parent=1 // pred_region
      %s13 = ssub.s32 256, 256
      %14 = vsyncadd [#allocation3], %s13
      %s15 = sshll.u32 [#allocation2], 4
      %s16 = int_to_ptr.vmem [resolvable:$true] %s15
      %21 = dma.hbm_to_vmem [thread:$0]  %s0, 256, %s16, [#allocation3], 128, 128, 8
    $region5: #{tpu_custom_call.1} parent=1 // pred_fallthru
      _
    // Predicated region
    $region6: #{tpu_custom_call.1} parent=1 // pred_check
      _
    $region7: #{tpu_custom_call.1} parent=1 // pred_check_branch
      %23 = sbr.rel (0) target = $region9
    $region8: #{tpu_custom_call.1} parent=1 // pred_region
      %s25 = ssub.s32 256, 256
      %26 = vsyncadd [#allocation6], %s25
      %s27 = sshll.u32 [#allocation5], 4
      %s28 = int_to_ptr.vmem [resolvable:$true] %s27
      %33 = dma.hbm_to_vmem [thread:$0]  %s1, 256, %s28, [#allocation6], 128, 128, 8
    $region9: #{tpu_custom_call.1} parent=1 // pred_fallthru
      _
    // Predicated region
    $region10: #{tpu_custom_call.1} parent=1 // pred_check
      _
    $region11: #{tpu_custom_call.1} parent=1 // pred_check_branch
      %35 = sbr.rel (0) target = $region13
    $region12: #{tpu_custom_call.1} parent=1 // pred_region
      %36 = dma.done [#allocation3], 256
    $region13: #{tpu_custom_call.1} parent=1 // pred_fallthru
      _
    // Predicated region
    $region14: #{tpu_custom_call.1} parent=1 // pred_check
      _
    $region15: #{tpu_custom_call.1} parent=1 // pred_check_branch
      %38 = sbr.rel (0) target = $region17
    $region16: #{tpu_custom_call.1} parent=1 // pred_region
      %39 = dma.done [#allocation6], 256
    $region17: #{tpu_custom_call.1} parent=1 // pred_fallthru
      _
    %v40 = vld [vmem:[#allocation2] sm:$0xff]
    %v41 = vld [vmem:[#allocation2 + $0x8] sm:$0xff]
    %42 = vxpose.xlu0.b32.start [1/16] %v40, 128
    %43 = vxpose.xlu0.b32.cont [2/16] %v41, 128
    %44 = vxpose.xlu0.b32.cont [3/16] 0.0, 128
    %45 = vxpose.xlu0.b32.cont [4/16] 0.0, 128
    %46 = vxpose.xlu0.b32.cont [5/16] 0.0, 128
    %47 = vxpose.xlu0.b32.cont [6/16] 0.0, 128
    %48 = vxpose.xlu0.b32.cont [7/16] 0.0, 128
    %49 = vxpose.xlu0.b32.cont [8/16] 0.0, 128
    %50 = vxpose.xlu0.b32.cont [9/16] 0.0, 128
    %51 = vxpose.xlu0.b32.cont [10/16] 0.0, 128
    %52 = vxpose.xlu0.b32.cont [11/16] 0.0, 128
    %53 = vxpose.xlu0.b32.cont [12/16] 0.0, 128
    %54 = vxpose.xlu0.b32.cont [13/16] 0.0, 128
    %55 = vxpose.xlu0.b32.cont [14/16] 0.0, 128
    %56 = vxpose.xlu0.b32.cont [15/16] 0.0, 128
    %57 = vxpose.xlu0.b32.end [16/16] 0.0, 128
    %v58 = vpop.trf.xlu0
    %v59 = vpop.trf.xlu0
    %v60 = vpop.trf.xlu0
    %v61 = vpop.trf.xlu0
    %v62 = vpop.trf.xlu0
    %v63 = vpop.trf.xlu0
    %v64 = vpop.trf.xlu0
    %v65 = vpop.trf.xlu0
    %v66 = vpop.trf.xlu0
    %v67 = vpop.trf.xlu0
    %v68 = vpop.trf.xlu0
    %v69 = vpop.trf.xlu0
    %v70 = vpop.trf.xlu0
    %v71 = vpop.trf.xlu0
    %v72 = vpop.trf.xlu0
    %v73 = vpop.trf.xlu0
    %v74 = vld [vmem:[#allocation5] sm:$0xff]
    %v75 = vld [vmem:[#allocation5 + $0x8] sm:$0xff]
    %76 = vxpose.xlu0.b32.start [1/16] %v74, 128
    %77 = vxpose.xlu0.b32.cont [2/16] %v75, 128
    %78 = vxpose.xlu0.b32.cont [3/16] 0.0, 128
    %79 = vxpose.xlu0.b32.cont [4/16] 0.0, 128
    %80 = vxpose.xlu0.b32.cont [5/16] 0.0, 128
    %81 = vxpose.xlu0.b32.cont [6/16] 0.0, 128
    %82 = vxpose.xlu0.b32.cont [7/16] 0.0, 128
    %83 = vxpose.xlu0.b32.cont [8/16] 0.0, 128
    %84 = vxpose.xlu0.b32.cont [9/16] 0.0, 128
    %85 = vxpose.xlu0.b32.cont [10/16] 0.0, 128
    %86 = vxpose.xlu0.b32.cont [11/16] 0.0, 128
    %87 = vxpose.xlu0.b32.cont [12/16] 0.0, 128
    %88 = vxpose.xlu0.b32.cont [13/16] 0.0, 128
    %89 = vxpose.xlu0.b32.cont [14/16] 0.0, 128
    %90 = vxpose.xlu0.b32.cont [15/16] 0.0, 128
    %91 = vxpose.xlu0.b32.end [16/16] 0.0, 128
    %v92 = vpop.trf.xlu0
    %v93 = vpop.trf.xlu0
    %v94 = vpop.trf.xlu0
    %v95 = vpop.trf.xlu0
    %v96 = vpop.trf.xlu0
    %v97 = vpop.trf.xlu0
    %v98 = vpop.trf.xlu0
    %v99 = vpop.trf.xlu0
    %v100 = vpop.trf.xlu0
    %v101 = vpop.trf.xlu0
    %v102 = vpop.trf.xlu0
    %v103 = vpop.trf.xlu0
    %v104 = vpop.trf.xlu0
    %v105 = vpop.trf.xlu0
    %v106 = vpop.trf.xlu0
    %v107 = vpop.trf.xlu0
    %v108 = vsub.f32 1.0, %v92
    %v109 = vsub.f32 1.0, %v93
    %v110 = vmul.f32 %v108, %v58
    %v111 = vmul.f32 %v109, %v59
    %v112 = vadd.f32 %v110, 1.0
    %v113 = vadd.f32 %v111, 1.0
    %vm114 = vcmask 130048
    %v115 = vsel %vm114, %v110, 0.0
    %v116 = vsel %vm114, %v111, 0.0
    %v117 = vadd.f32 %v115, %v116
    %v118 = vrot.slane %v117, 4
    %v119 = vadd.f32 %v117, %v118
    %v120 = vrot.slane %v119, 2
    %v121 = vadd.f32 %v119, %v120
    %v122 = vrot.slane %v121, 1
    %v123 = vadd.f32 %v121, %v122
    %v124 = vadd.f32 %v123, 16.0
    %v125 = vadd.f32 %v112, 6.0
    %v126 = vadd.f32 %v113, 6.0
    %v127 = vlog2.pop %v125
    %v128 = vmul.f32 %v127, 0.6931472
    %v129 = vlog2.pop %v126
    %v130 = vmul.f32 %v129, 0.6931472
    %v131 = vrcp.pop %v125
    %v132 = vmul.f32 1.0, %v131
    %v133 = vrcp.pop %v126
    %v134 = vmul.f32 1.0, %v133
    %v135 = vmul.f32 %v132, %v132
    %v136 = vmul.f32 %v134, %v134
    %v137 = vadd.f32 %v112, 1.0
    %v138 = vadd.f32 %v113, 1.0
    %v139 = vmul.f32 %v112, %v137
    %v140 = vmul.f32 %v113, %v138
    %v141 = vadd.f32 %v112, 2.0
    %v142 = vadd.f32 %v113, 2.0
    %v143 = vmul.f32 %v139, %v141
    %v144 = vmul.f32 %v140, %v142
    %v145 = vadd.f32 %v112, 3.0
    %v146 = vadd.f32 %v113, 3.0
    %v147 = vmul.f32 %v143, %v145
    %v148 = vmul.f32 %v144, %v146
    %v149 = vadd.f32 %v112, 4.0
    %v150 = vadd.f32 %v113, 4.0
    %v151 = vmul.f32 %v147, %v149
    %v152 = vmul.f32 %v148, %v150
    %v153 = vadd.f32 %v112, 5.0
    %v154 = vadd.f32 %v113, 5.0
    %v155 = vmul.f32 %v151, %v153
    %v156 = vmul.f32 %v152, %v154
    %v157 = vmul.f32 %v112, 6.0
    %v158 = vmul.f32 %v113, 6.0
    %v159 = vadd.f32 %v157, 75.0
    %v160 = vadd.f32 %v158, 75.0
    %v161 = vmul.f32 %v159, %v112
    %v162 = vmul.f32 %v160, %v113
    %v163 = vadd.f32 %v161, 340.0
    %v164 = vadd.f32 %v162, 340.0
    %v165 = vmul.f32 %v163, %v112
    %v166 = vmul.f32 %v164, %v113
    %v167 = vadd.f32 %v165, 675.0
    %v168 = vadd.f32 %v166, 675.0
    %v169 = vmul.f32 %v167, %v112
    %v170 = vmul.f32 %v168, %v113
    %v171 = vadd.f32 %v169, 548.0
    %v172 = vadd.f32 %v170, 548.0
    %v173 = vmul.f32 %v171, %v112
    %v174 = vmul.f32 %v172, %v113
    %v175 = vadd.f32 %v173, 120.0
    %v176 = vadd.f32 %v174, 120.0
    %v177 = vlog2.pop %v155
    %v178 = vmul.f32 %v177, 0.6931472
    %v179 = vlog2.pop %v156
    %v180 = vmul.f32 %v179, 0.6931472
    %v181 = vrcp.pop %v155
    %v182 = vmul.f32 1.0, %v181
    %v183 = vrcp.pop %v156
    %v184 = vmul.f32 1.0, %v183
    %v185 = vsub.f32 %v125, 0.5
    %v186 = vsub.f32 %v126, 0.5
    %v187 = vmul.f32 %v185, %v128
    %v188 = vmul.f32 %v186, %v130
    %v189 = vsub.f32 %v187, %v125
    %v190 = vsub.f32 %v188, %v126
    %v191 = vadd.f32 %v189, 0.9189385
    %v192 = vadd.f32 %v190, 0.9189385
    %v193 = vmul.f32 %v135, 0.0007936508
    %v194 = vmul.f32 %v136, 0.0007936508
    %v195 = vsub.f32 0.0027777778, %v193
    %v196 = vsub.f32 0.0027777778, %v194
    %v197 = vmul.f32 %v135, %v195
    %v198 = vmul.f32 %v136, %v196
    %v199 = vsub.f32 0.083333336, %v197
    %v200 = vsub.f32 0.083333336, %v198
    %v201 = vmul.f32 %v132, %v199
    %v202 = vmul.f32 %v134, %v200
    %v203 = vadd.f32 %v191, %v201
    %v204 = vadd.f32 %v192, %v202
    %v205 = vsub.f32 %v203, %v178
    %v206 = vsub.f32 %v204, %v180
    %v207 = vmul.f32 %v132, 0.5
    %v208 = vmul.f32 %v134, 0.5
    %v209 = vsub.f32 %v128, %v207
    %v210 = vsub.f32 %v130, %v208
    %v211 = vmul.f32 %v135, 0.003968254
    %v212 = vmul.f32 %v136, 0.003968254
    %v213 = vsub.f32 0.008333334, %v211
    %v214 = vsub.f32 0.008333334, %v212
    %v215 = vmul.f32 %v135, %v213
    %v216 = vmul.f32 %v136, %v214
    %v217 = vsub.f32 0.083333336, %v215
    %v218 = vsub.f32 0.083333336, %v216
    %v219 = vmul.f32 %v135, %v217
    %v220 = vmul.f32 %v136, %v218
    %v221 = vsub.f32 %v209, %v219
    %v222 = vsub.f32 %v210, %v220
    %v223 = vmul.f32 %v175, %v182
    %v224 = vmul.f32 %v176, %v184
    %v225 = vsub.f32 %v221, %v223
    %v226 = vsub.f32 %v222, %v224
    %v227 = vadd.f32 %v124, 6.0
    %v228 = vlog2.pop %v227
    %v229 = vmul.f32 %v228, 0.6931472
    %v230 = vrcp.pop %v227
    %v231 = vmul.f32 1.0, %v230
    %v232 = vmul.f32 %v231, %v231
    %v233 = vadd.f32 %v124, 1.0
    %v234 = vmul.f32 %v124, %v233
    %v235 = vadd.f32 %v124, 2.0
    %v236 = vmul.f32 %v234, %v235
    %v237 = vadd.f32 %v124, 3.0
    %v238 = vmul.f32 %v236, %v237
    %v239 = vadd.f32 %v124, 4.0
    %v240 = vmul.f32 %v238, %v239
    %v241 = vadd.f32 %v124, 5.0
    %v242 = vmul.f32 %v240, %v241
    %v243 = vmul.f32 %v124, 6.0
    %v244 = vadd.f32 %v243, 75.0
    %v245 = vmul.f32 %v244, %v124
    %v246 = vadd.f32 %v245, 340.0
    %v247 = vmul.f32 %v246, %v124
    %v248 = vadd.f32 %v247, 675.0
    %v249 = vmul.f32 %v248, %v124
    %v250 = vadd.f32 %v249, 548.0
    %v251 = vmul.f32 %v250, %v124
    %v252 = vadd.f32 %v251, 120.0
    %v253 = vlog2.pop %v242
    %v254 = vmul.f32 %v253, 0.6931472
    %v255 = vrcp.pop %v242
    %v256 = vmul.f32 1.0, %v255
    %v257 = vsub.f32 %v227, 0.5
    %v258 = vmul.f32 %v257, %v229
    %v259 = vsub.f32 %v258, %v227
    %v260 = vadd.f32 %v259, 0.9189385
    %v261 = vmul.f32 %v232, 0.0007936508
    %v262 = vsub.f32 0.0027777778, %v261
    %v263 = vmul.f32 %v232, %v262
    %v264 = vsub.f32 0.083333336, %v263
    %v265 = vmul.f32 %v231, %v264
    %v266 = vadd.f32 %v260, %v265
    %v267 = vsub.f32 %v266, %v254
    %v268 = vmul.f32 %v231, 0.5
    %v269 = vsub.f32 %v229, %v268
    %v270 = vmul.f32 %v232, 0.003968254
    %v271 = vsub.f32 0.008333334, %v270
    %v272 = vmul.f32 %v232, %v271
    %v273 = vsub.f32 0.083333336, %v272
    %v274 = vmul.f32 %v232, %v273
    %v275 = vsub.f32 %v269, %v274
    %v276 = vmul.f32 %v252, %v256
    %v277 = vsub.f32 %v275, %v276
    %v278 = vsub.f32 %v267, 27.899271
    %v279 = vsel %vm114, %v205, 0.0
    %v280 = vsel %vm114, %v206, 0.0
    %v281 = vadd.f32 %v279, %v280
    %v282 = vrot.slane %v281, 4
    %v283 = vadd.f32 %v281, %v282
    %v284 = vrot.slane %v283, 2
    %v285 = vadd.f32 %v283, %v284
    %v286 = vrot.slane %v285, 1
    %v287 = vadd.f32 %v285, %v286
    %v288 = vsub.f32 %v278, %v287
    %v289 = vsub.f32 %v225, %v277
    %v290 = vsub.f32 %v226, %v277
    %v291 = vmul.f32 %v110, %v289
    %v292 = vmul.f32 %v111, %v290
    %v293 = vsel %vm114, %v291, 0.0
    %v294 = vsel %vm114, %v292, 0.0
    %v295 = vadd.f32 %v293, %v294
    %v296 = vrot.slane %v295, 4
    %v297 = vadd.f32 %v295, %v296
    %v298 = vrot.slane %v297, 2
    %v299 = vadd.f32 %v297, %v298
    %v300 = vrot.slane %v299, 1
    %v301 = vadd.f32 %v299, %v300
    %v302 = vadd.f32 %v288, %v301
    %v303 = vsel %vm114, %v302, 0.0
    %304 = vadd.xlane.f32.xlu0 %v303
    %v305 = vpop.xlane.xlu0 %304
    %306 = vst [vmem:[#allocation7] sm:$0x1] %v305
    // Predicated region
    $region18: #{tpu_custom_call.1} parent=1 // pred_check
      _
    $region19: #{tpu_custom_call.1} parent=1 // pred_check_branch
      %308 = sbr.rel (0) target = $region21
    $region20: #{tpu_custom_call.1} parent=1 // pred_region
      %s310 = ssub.s32 16, 16
      %311 = vsyncadd [#allocation4], %s310
      %s313 = sshll.u32 [#allocation7], 4
      %s314 = int_to_ptr.vmem [resolvable:$true] %s313
      %316 = dma.vmem_to_hbm [thread:$0]  %s314, 16, %s2, [#allocation4]
    $region21: #{tpu_custom_call.1} parent=1 // pred_fallthru
      _
    // Predicated region
    $region22: #{tpu_custom_call.1} parent=1 // pred_check
      _
    $region23: #{tpu_custom_call.1} parent=1 // pred_check_branch
      %318 = sbr.rel (0) target = $region25
    $region24: #{tpu_custom_call.1} parent=1 // pred_region
      %319 = dma.done [#allocation4], 16
    $region25: #{tpu_custom_call.1} parent=1 // pred_fallthru
      _
    %320 = vsyncpa [#allocation3], 1
    %321 = vsyncpa [#allocation6], 1
    %322 = vsyncpa [#allocation4], 1

</llo_original>
